<compile_context>
chip_gen: v7x
topology: tpu7x:2x2x1
jax: 0.10.0
libtpu: 0.0.40
codegen_flags: <defaults>
</compile_context>

<pallas_src>
import functools

import jax
import jax.numpy as jnp
from jax import lax
from jax.experimental import pallas as pl
from jax.experimental.pallas import tpu as pltpu


def _round_up(x, m):
    return ((x + m - 1) // m) * m


def mock_module_kernel(x_ref, w_ref, b_ref, y_ref, pred_ref, loss_ref, *,
                       batch, block_rows):
    # Inputs may be bf16 (halved HBM traffic); all math stays f32.
    x = x_ref[...].astype(jnp.float32)        # (blk, F) tile of continuous_features
    w = w_ref[...]                            # (1, F)   f32 lane-dense weight, resident
    b = b_ref[0]                              # f32 scalar bias from SMEM

    # Linear(F -> 1): VPU multiply + lane reduce (no MXU for K=10, N=1).
    z_col = jnp.sum(x * w, axis=1, keepdims=True) + b            # (blk, 1)

    # Swap to a lane-dense (1, blk) row: full-width pred store, and the BCE math
    # below runs in the same lane-dense domain as the (1, blk) labels tile.
    z = pltpu.einshape("ab->ba", z_col)                           # (1, blk)
    y = y_ref[...].astype(jnp.float32)                            # (1, blk)

    # Numerically stable BCE-with-logits, elementwise:
    #   loss = max(z, 0) - z*y + log(1 + exp(-|z|))
    loss_elem = jnp.maximum(z, 0.0) - z * y + jnp.log1p(jnp.exp(-jnp.abs(z)))

    # Ragged trailing tile: inputs are NOT padded in the wrapper, so out-of-range
    # rows of the last tile hold garbage.  Use a select (not a multiply) so any
    # NaN/Inf from garbage rows cannot reach the loss.  Static no-op if blk | B.
    if batch % block_rows != 0:
        col = (lax.broadcasted_iota(jnp.int32, (1, block_rows), 1)
               + pl.program_id(0) * block_rows)
        loss_elem = jnp.where(col < batch, loss_elem, 0.0)

    # Per-tile partial loss sum, replicated across one 128-lane row (unmasked
    # store).  The wrapper combines partials and divides by the true B, which
    # keeps the grid axis safe to run as "parallel" (no shared accumulator).
    loss_ref[...] = jnp.broadcast_to(jnp.sum(loss_elem), (1, 128))

    # Lane-dense pred store (full-width vst); out-of-range lanes of the last tile
    # hold garbage and are sliced off in the wrapper.
    pred_ref[...] = z.astype(pred_ref.dtype)


def mock_module_forward(x, w, b, labels, *, target_block_rows=8192):
    """MockModule.forward.

    Args:
      x:      (B, F) f32 or bf16  continuous_features
      w:      (1, F) Linear weight, PyTorch layout (out_features, in_features)
      b:      (1,)   Linear bias
      labels: (B, 1) f32 or bf16
    Returns:
      (loss scalar f32, pred (B, 1) f32) — same semantics as the PyTorch module.
    """
    B, F = x.shape
    assert w.shape == (1, F) and b.shape == (1,) and labels.shape == (B, 1)

    w = w.astype(jnp.float32)
    b = b.astype(jnp.float32)
    # Lane-dense labels: (B,1) -> (1,B) is a contiguous reshape (no HBM pass).
    labels_row = labels.reshape(1, B)

    # ---- tile-size selection (lane-padding-aware VMEM budget) ------------------
    # Per tile row in VMEM (double-buffered in/out):
    #   x tile   (blk, F): F=10 lanes pad to 128   -> 128 * itemsize bytes/row
    #   labels   (1, blk): 1 sublane pads to 8     ->   8 * itemsize bytes/row
    #   pred out (1, blk) f32                      ->   8 * 4        bytes/row
    per_row = (2 * (128 * x.dtype.itemsize + 8 * labels_row.dtype.itemsize)
               + 2 * 8 * 4)
    vmem_budget = 20 * 1024 * 1024           # under the 32 MiB limit set below
    blk_cap = max(128, (vmem_budget // per_row) // 128 * 128)

    if B <= target_block_rows:
        # Whole batch as one full-array block: no OOB rows, no mask, one step.
        blk = B
    else:
        # Multiple of 128 (lane-dense pred/labels tiles); at least 2 grid steps
        # so v7x's two TensorCores can split the batch; capped by VMEM budget.
        blk = min(target_block_rows, blk_cap, _round_up(pl.cdiv(B, 2), 128))
    grid = pl.cdiv(B, blk)
    b_out = grid * blk   # only OUTPUTS are padded to whole tiles; inputs are not

    kernel = functools.partial(mock_module_kernel, batch=B, block_rows=blk)

    x_bytes = B * F * x.dtype.itemsize
    y_bytes = B * labels_row.dtype.itemsize

    pred_row, loss_parts = pl.pallas_call(
        kernel,
        grid=(grid,),
        in_specs=[
            pl.BlockSpec((blk, F), lambda i: (i, 0)),     # x tile (double-buffered)
            pl.BlockSpec((1, F), lambda i: (0, 0)),       # lane-dense weight, resident
            pl.BlockSpec(memory_space=pltpu.SMEM),        # bias scalar in SMEM
            pl.BlockSpec((1, blk), lambda i: (0, i)),     # lane-dense labels tile
        ],
        out_specs=(
            pl.BlockSpec((1, blk), lambda i: (0, i)),     # lane-dense pred row slab
            pl.BlockSpec((1, 128), lambda i: (0, i)),     # per-tile loss partial sums
        ),
        out_shape=(
            jax.ShapeDtypeStruct((1, b_out), jnp.float32),
            jax.ShapeDtypeStruct((1, grid * 128), jnp.float32),
        ),
        compiler_params=pltpu.CompilerParams(
            dimension_semantics=("parallel",),            # v7x: both TCs share the batch
            vmem_limit_bytes=32 * 1024 * 1024,            # covers v5e's 16 MiB default
        ),
        cost_estimate=pl.CostEstimate(
            flops=int(B * (2 * F + 7)),
            transcendentals=int(2 * B),
            bytes_accessed=int(x_bytes + y_bytes
                               + 4 * (F + 1 + b_out + grid * 128)),
        ),
    )(x, w, b, labels_row)

    pred = pred_row[0, :B].reshape(B, 1)
    loss = jnp.sum(loss_parts.reshape(grid, 128)[:, 0]) / B
    return loss, pred


def _reference(x, w, b, labels):
    z = x @ w.T + b
    loss = jnp.mean(jnp.maximum(z, 0.0) - z * labels + jnp.log1p(jnp.exp(-jnp.abs(z))))
    return loss, z


if __name__ == "__main__":
    key = jax.random.PRNGKey(0)
    k_x, k_y, k_w, k_b, k_x2, k_y2 = jax.random.split(key, 6)

    F = 10  # MockDataclassBatch.continuous_features: (B, 10), labels: (B, 1)

    # Deterministic "parameters" mimicking torch.nn.Linear(10, 1) init:
    # U(-1/sqrt(F), 1/sqrt(F)) for both weight (1, F) and bias (1,).
    bound = 1.0 / jnp.sqrt(jnp.float32(F))
    w = jax.random.uniform(k_w, (1, F), jnp.float32, -bound, bound)
    b = jax.random.uniform(k_b, (1,), jnp.float32, -bound, bound)

    # --- small demo batch: single full-array block, no masking -----------------
    B = 8
    x = jax.random.normal(k_x, (B, F), jnp.float32)
    labels = jax.random.bernoulli(k_y, 0.5, (B, 1)).astype(jnp.float32)

    loss, pred = mock_module_forward(x, w, b, labels)
    jax.block_until_ready((loss, pred))

    loss_ref, pred_ref = _reference(x, w, b, labels)
    assert pred.shape == (B, 1)
    assert jnp.allclose(pred, pred_ref, atol=1e-5), "pred mismatch (B=8)"
    assert jnp.allclose(loss, loss_ref, atol=1e-5), "loss mismatch (B=8)"

    # --- multi-tile ragged grid, UNPADDED inputs (small target to exercise it) --
    B2 = 600
    x2 = jax.random.normal(k_x2, (B2, F), jnp.float32)
    labels2 = jax.random.bernoulli(k_y2, 0.5, (B2, 1)).astype(jnp.float32)

    loss2, pred2 = mock_module_forward(x2, w, b, labels2, target_block_rows=256)
    jax.block_until_ready((loss2, pred2))

    loss2_ref, pred2_ref = _reference(x2, w, b, labels2)
    assert pred2.shape == (B2, 1)
    assert jnp.allclose(pred2, pred2_ref, atol=1e-5), "pred mismatch (B=600)"
    assert jnp.allclose(loss2, loss2_ref, atol=1e-4), "loss mismatch (B=600)"

    # --- bf16 inputs (halved HBM traffic), f32 in-kernel math -------------------
    x3 = x2.astype(jnp.bfloat16)
    labels3 = labels2.astype(jnp.bfloat16)
    loss3, pred3 = mock_module_forward(x3, w, b, labels3, target_block_rows=128)
    jax.block_until_ready((loss3, pred3))

    loss3_ref, pred3_ref = _reference(x3.astype(jnp.float32), w, b,
                                      labels3.astype(jnp.float32))
    assert pred3.shape == (B2, 1)
    assert jnp.allclose(pred3, pred3_ref, atol=1e-4), "pred mismatch (bf16)"
    assert jnp.allclose(loss3, loss3_ref, atol=1e-4), "loss mismatch (bf16)"

    print("KERNEL_OK")
</pallas_src>

<mosaic_0001>
module attributes {stable_mosaic.version = 11 : i64} {
  func.func @mock_module_kernel(%arg0: i32, %arg1: memref<8x10xf32, #tpu.memory_space<vmem>>, %arg2: memref<1x10xf32, #tpu.memory_space<vmem>>, %arg3: memref<1xf32, #tpu.memory_space<smem>>, %arg4: memref<1x8xf32, #tpu.memory_space<vmem>>, %arg5: memref<1x8xf32, #tpu.memory_space<vmem>>, %arg6: memref<1x128xf32, #tpu.memory_space<vmem>>) attributes {dimension_semantics = [#tpu.dimension_semantics<parallel>], iteration_bounds = array<i64: 1>, scalar_prefetch = 0 : i64, scratch_operands = 0 : i64, tpu.core_type = #tpu.core_type<tc>, window_params = [{transform_indices = @transform_0, window_bounds = array<i64: 8, 10>}, {pipeline_mode = #tpu.pipeline_mode<synchronous>, transform_indices = @transform_1, window_bounds = array<i64: 1, 10>}, {transform_indices = @transform_2, window_bounds = array<i64: 1>}, {transform_indices = @transform_3, window_bounds = array<i64: 1, 8>}, {transform_indices = @transform_4, window_bounds = array<i64: 1, 8>}, {transform_indices = @transform_5, window_bounds = array<i64: 1, 128>}]} {
    %c0 = arith.constant 0 : index
    %c0_0 = arith.constant 0 : index
    %0 = vector.load %arg1[%c0, %c0_0] : memref<8x10xf32, #tpu.memory_space<vmem>>, vector<8x10xf32>
    %c0_1 = arith.constant 0 : index
    %c0_2 = arith.constant 0 : index
    %1 = vector.load %arg2[%c0_1, %c0_2] : memref<1x10xf32, #tpu.memory_space<vmem>>, vector<1x10xf32>
    %c0_3 = arith.constant 0 : index
    %2 = memref.load %arg3[%c0_3] : memref<1xf32, #tpu.memory_space<smem>>
    %3 = vector.broadcast %1 : vector<1x10xf32> to vector<8x10xf32>
    %4 = arith.mulf %0, %3 : vector<8x10xf32>
    %cst = arith.constant dense<0.000000e+00> : vector<8xf32>
    %5 = vector.multi_reduction <add>, %4, %cst [1] : vector<8x10xf32> to vector<8xf32>
    %6 = vector.shape_cast %5 : vector<8xf32> to vector<8x1xf32>
    %7 = vector.broadcast %2 : f32 to vector<8x1xf32>
    %8 = arith.addf %6, %7 : vector<8x1xf32>
    %9 = tpu.transpose %8, [1, 0] : vector<8x1xf32> -> vector<1x8xf32>
    %c0_4 = arith.constant 0 : index
    %c0_5 = arith.constant 0 : index
    %10 = vector.load %arg4[%c0_4, %c0_5] : memref<1x8xf32, #tpu.memory_space<vmem>>, vector<1x8xf32>
    %cst_6 = arith.constant 0.000000e+00 : f32
    %11 = vector.broadcast %cst_6 : f32 to vector<1x8xf32>
    %12 = arith.maximumf %9, %11 : vector<1x8xf32>
    %13 = arith.mulf %9, %10 : vector<1x8xf32>
    %14 = arith.subf %12, %13 : vector<1x8xf32>
    %15 = math.absf %9 : vector<1x8xf32>
    %cst_7 = arith.constant 0.000000e+00 : f32
    %16 = vector.broadcast %cst_7 : f32 to vector<1x8xf32>
    %17 = arith.subf %16, %15 : vector<1x8xf32>
    %18 = math.exp %17 : vector<1x8xf32>
    %19 = math.log1p %18 : vector<1x8xf32>
    %20 = arith.addf %14, %19 : vector<1x8xf32>
    %21 = vector.shape_cast %20 : vector<1x8xf32> to vector<1x1x8xf32>
    %cst_8 = arith.constant dense<0.000000e+00> : vector<1xf32>
    %22 = vector.multi_reduction <add>, %21, %cst_8 [1, 2] : vector<1x1x8xf32> to vector<1xf32>
    %23 = vector.shape_cast %22 : vector<1xf32> to vector<1x1x1xf32>
    %24 = vector.extract %23[0, 0, 0] : f32 from vector<1x1x1xf32>
    %25 = vector.broadcast %24 : f32 to vector<1x128xf32>
    %c0_9 = arith.constant 0 : index
    %c0_10 = arith.constant 0 : index
    %26 = vector.load %arg6[%c0_9, %c0_10] : memref<1x128xf32, #tpu.memory_space<vmem>>, vector<1x128xf32>
    tpu.vector_store %arg6[%c0_9, %c0_10], %25 {strides = array<i32>} : memref<1x128xf32, #tpu.memory_space<vmem>>, vector<1x128xf32>,
    %c0_11 = arith.constant 0 : index
    %c0_12 = arith.constant 0 : index
    %27 = vector.load %arg5[%c0_11, %c0_12] : memref<1x8xf32, #tpu.memory_space<vmem>>, vector<1x8xf32>
    tpu.vector_store %arg5[%c0_11, %c0_12], %9 {strides = array<i32>} : memref<1x8xf32, #tpu.memory_space<vmem>>, vector<1x8xf32>,
    return
  }
  func.func @transform_0(%arg0: i32) -> (i32, i32) {
    %c0_i32 = arith.constant 0 : i32
    %c0_i32_0 = arith.constant 0 : i32
    return %arg0, %c0_i32 : i32, i32
  }
  func.func @transform_1(%arg0: i32) -> (i32, i32) {
    %c0_i32 = arith.constant 0 : i32
    %c0_i32_0 = arith.constant 0 : i32
    %c0_i32_1 = arith.constant 0 : i32
    return %c0_i32, %c0_i32_0 : i32, i32
  }
  func.func @transform_2(%arg0: i32) -> i32 {
    %c0_i32 = arith.constant 0 : i32
    %c0_i32_0 = arith.constant 0 : i32
    return %c0_i32 : i32
  }
  func.func @transform_3(%arg0: i32) -> (i32, i32) {
    %c0_i32 = arith.constant 0 : i32
    %c0_i32_0 = arith.constant 0 : i32
    return %c0_i32, %arg0 : i32, i32
  }
  func.func @transform_4(%arg0: i32) -> (i32, i32) {
    %c0_i32 = arith.constant 0 : i32
    %c0_i32_0 = arith.constant 0 : i32
    return %c0_i32, %arg0 : i32, i32
  }
  func.func @transform_5(%arg0: i32) -> (i32, i32) {
    %c0_i32 = arith.constant 0 : i32
    %c0_i32_0 = arith.constant 0 : i32
    return %c0_i32, %arg0 : i32, i32
  }
}

</mosaic_0001>

<llo_original>
// kernel: tpu_custom_call.1
$region0: #{tpu_custom_call.1}
  #allocation0 [shape = 'u32[]', space=smem, size = 0x4, offset = 0x4, fixed_abs, tag = 'smem constant byte address 0x4 - core index']
  #allocation1 [shape = 'u32[144,128]{1,0:T(1,128)}', space=vmem, size = 0x12000, scoped, tag = 'internal scratch']
  #allocation2 [shape = 'f32[1]{0:T(128)S(6)}', space=smem, size = 0x200, scoped, tag = 'scoped memory for tpu_custom_call.1']
  %s0 = inlined_call_operand.hbm [shape: f32[8,10], index: 0, kind: input, shape index: {}]
  %s1 = inlined_call_operand.vmem [shape: f32[1,10], index: 1, kind: input, shape index: {}]
  %s2 = inlined_call_operand.<no memory space> [shape: f32[1], index: 2, kind: input, shape index: {}]
  %s3 = inlined_call_operand.vmem [shape: f32[1,8], index: 3, kind: input, shape index: {}]
  %s4 = inlined_call_operand.hbm [shape: f32[1,8], index: 4, kind: output, shape index: {0}]
  %s5 = inlined_call_operand.hbm [shape: f32[1,128], index: 5, kind: output, shape index: {1}]
  %6 = xla_tuple %s4, %s5
  %s7 = sld [smem:[#allocation0]]
  $region38: #{tpu_custom_call.1} parent=0
    _
  %s9 = ssub.s32 1, %s7
  %s10 = scalar_select 0, %s9, %s7
  %11 = sst [smem:[#allocation2]] %s2
  $region1: #{tpu_custom_call.1} parent=0
    #allocation3 [shape = 'u8[4096]{0}', space=vmem, size = 0x1000, scoped, tag = 'input window, operand 0, single buffered']
    #allocation4 [shape = 's32[1]{0}', space=sflag, size = 0x4, scoped, tag = 'scoped memory for tpu_custom_call.1']
    #allocation5 [shape = 's32[1]{0}', space=sflag, size = 0x4, scoped, tag = 'scoped memory for tpu_custom_call.1']
    #allocation6 [shape = 'u8[512]{0}', space=vmem, size = 0x400, scoped, tag = 'output window, operand 0, single buffered']
    #allocation7 [shape = 'u8[512]{0}', space=vmem, size = 0x400, scoped, tag = 'output window, operand 1, single buffered']
    #allocation8 [shape = 's32[1]{0}', space=sflag, size = 0x4, scoped, tag = 'scoped memory for tpu_custom_call.1']
    %12 = vsyncpa [#allocation4], 0
    %13 = vsyncpa [#allocation5], 0
    %14 = vsyncpa [#allocation8], 0
    // Predicated region
    $region2: #{tpu_custom_call.1} parent=1 // pred_check
      _
    $region3: #{tpu_custom_call.1} parent=1 // pred_check_branch
      %16 = sbr.rel (0) target = $region5
    $region4: #{tpu_custom_call.1} parent=1 // pred_region
      %s18 = ssub.s32 128, 128
      %19 = vsyncadd [#allocation4], %s18
      %s21 = sshll.u32 [#allocation3], 4
      %s22 = int_to_ptr.vmem [resolvable:$true] %s21
      %24 = dma.hbm_to_vmem [thread:$0]  %s0, 128, %s22, [#allocation4]
    $region5: #{tpu_custom_call.1} parent=1 // pred_fallthru
      _
    // Predicated region
    $region6: #{tpu_custom_call.1} parent=1 // pred_check
      _
    $region7: #{tpu_custom_call.1} parent=1 // pred_check_branch
      %26 = sbr.rel (0) target = $region9
    $region8: #{tpu_custom_call.1} parent=1 // pred_region
      _
    $region9: #{tpu_custom_call.1} parent=1 // pred_fallthru
      _
    // Predicated region
    $region10: #{tpu_custom_call.1} parent=1 // pred_check
      _
    $region11: #{tpu_custom_call.1} parent=1 // pred_check_branch
      %28 = sbr.rel (0) target = $region13
    $region12: #{tpu_custom_call.1} parent=1 // pred_region
      _
    $region13: #{tpu_custom_call.1} parent=1 // pred_fallthru
      _
    // Predicated region
    $region14: #{tpu_custom_call.1} parent=1 // pred_check
      _
    $region15: #{tpu_custom_call.1} parent=1 // pred_check_branch
      %30 = sbr.rel (0) target = $region17
    $region16: #{tpu_custom_call.1} parent=1 // pred_region
      _
    $region17: #{tpu_custom_call.1} parent=1 // pred_fallthru
      _
    // Predicated region
    $region18: #{tpu_custom_call.1} parent=1 // pred_check
      _
    $region19: #{tpu_custom_call.1} parent=1 // pred_check_branch
      %32 = sbr.rel (0) target = $region21
    $region20: #{tpu_custom_call.1} parent=1 // pred_region
      %33 = dma.done [#allocation4], 128
    $region21: #{tpu_custom_call.1} parent=1 // pred_fallthru
      _
    %v34 = vld [vmem:[#allocation3] sm:$0xff]
    %v35 = vld [vmem:[%s1] sm:$0x1]
    %s36 = sld [smem:[#allocation2]]
    %v38 = vlaneseq
    %v39 = vshrl.u32 %v38, 7
    %v40 = vsub.s32 0, %v39
    %v41 = vrot.slane %v35, %v40
    %v43 = vmul.f32 %v34, %v41
    %vm44 = vcmask 80896
    %v45 = vsel %vm44, %v43, 0.0
    %46 = vadd.xlane.f32.xlu0 %v45
    %v47 = vpop.xlane.xlu0 %46
    %v48 = vstv %s36
    %v49 = vadd.f32 %v47, %v48
    %50 = vxpose.xlu0.b32.start [1/16] %v49, 128
    %51 = vxpose.xlu0.b32.cont [2/16] 0.0, 128
    %52 = vxpose.xlu0.b32.cont [3/16] 0.0, 128
    %53 = vxpose.xlu0.b32.cont [4/16] 0.0, 128
    %54 = vxpose.xlu0.b32.cont [5/16] 0.0, 128
    %55 = vxpose.xlu0.b32.cont [6/16] 0.0, 128
    %56 = vxpose.xlu0.b32.cont [7/16] 0.0, 128
    %57 = vxpose.xlu0.b32.cont [8/16] 0.0, 128
    %58 = vxpose.xlu0.b32.cont [9/16] 0.0, 128
    %59 = vxpose.xlu0.b32.cont [10/16] 0.0, 128
    %60 = vxpose.xlu0.b32.cont [11/16] 0.0, 128
    %61 = vxpose.xlu0.b32.cont [12/16] 0.0, 128
    %62 = vxpose.xlu0.b32.cont [13/16] 0.0, 128
    %63 = vxpose.xlu0.b32.cont [14/16] 0.0, 128
    %64 = vxpose.xlu0.b32.cont [15/16] 0.0, 128
    %65 = vxpose.xlu0.b32.end [16/16] 0.0, 128
    %v66 = vpop.trf.xlu0
    %v67 = vpop.trf.xlu0
    %v68 = vpop.trf.xlu0
    %v69 = vpop.trf.xlu0
    %v70 = vpop.trf.xlu0
    %v71 = vpop.trf.xlu0
    %v72 = vpop.trf.xlu0
    %v73 = vpop.trf.xlu0
    %v74 = vpop.trf.xlu0
    %v75 = vpop.trf.xlu0
    %v76 = vpop.trf.xlu0
    %v77 = vpop.trf.xlu0
    %v78 = vpop.trf.xlu0
    %v79 = vpop.trf.xlu0
    %v80 = vpop.trf.xlu0
    %v81 = vpop.trf.xlu0
    %v82 = vld [vmem:[%s3] sm:$0x1]
    %v83 = vmax.f32 %v66, 0.0
    %v84 = vmul.f32 %v66, %v82
    %v85 = vsub.f32 %v83, %v84
    %v86 = vand.u32 2147483647, %v66
    %v87 = vsub.f32 0.0, %v86
    %v88 = vmul.f32 %v87, 1.442695
    %v89 = vpow.pop %v88
    %v90 = vadd.f32 %v89, 1.0
    %v91 = vlog2.pop %v90
    %v92 = vmul.f32 %v91, 0.6931472
    %v93 = vmul.f32 -0.5, %v89
    %v94 = vadd.f32 %v93, 1.0
    %v95 = vmul.f32 %v94, %v89
    %v96 = vand.u32 2147483647, %v89
    %vm97 = vcmp.lt.f32.partialorder %v96, 0.0004427343
    %v98 = vsel %vm97, %v95, %v92
    %v99 = vadd.f32 %v85, %v98
    %vm100 = vcmask 57344
    %v101 = vsel %vm100, %v99, 0.0
    %102 = vadd.xlane.f32.xlu0 %v101
    %v103 = vpop.xlane.xlu0 %102
    %v104 = vrot.slane %v103, 4
    %v105 = vadd.f32 %v103, %v104
    %v106 = vrot.slane %v105, 2
    %v107 = vadd.f32 %v105, %v106
    %v108 = vrot.slane %v107, 1
    %v109 = vadd.f32 %v107, %v108
    %s110 = vtos %v109
    %v111 = vstv %s110
    %112 = vst [vmem:[#allocation7] sm:$0x1] %v111
    %113 = vst.msk [vmem:[#allocation6] sm:$0x1] %vm100, %v66
    // Predicated region
    $region22: #{tpu_custom_call.1} parent=1 // pred_check
      _
    $region23: #{tpu_custom_call.1} parent=1 // pred_check_branch
      %115 = sbr.rel (0) target = $region25
    $region24: #{tpu_custom_call.1} parent=1 // pred_region
      %s117 = ssub.s32 16, 16
      %118 = vsyncadd [#allocation5], %s117
      %s120 = sshll.u32 [#allocation6], 4
      %s121 = int_to_ptr.vmem [resolvable:$true] %s120
      %123 = dma.vmem_to_hbm [thread:$0]  %s121, 16, %s4, [#allocation5]
    $region25: #{tpu_custom_call.1} parent=1 // pred_fallthru
      _
    // Predicated region
    $region26: #{tpu_custom_call.1} parent=1 // pred_check
      _
    $region27: #{tpu_custom_call.1} parent=1 // pred_check_branch
      %125 = sbr.rel (0) target = $region29
    $region28: #{tpu_custom_call.1} parent=1 // pred_region
      %s127 = ssub.s32 16, 16
      %128 = vsyncadd [#allocation8], %s127
      %s130 = sshll.u32 [#allocation7], 4
      %s131 = int_to_ptr.vmem [resolvable:$true] %s130
      %133 = dma.vmem_to_hbm [thread:$0]  %s131, 16, %s5, [#allocation8]
    $region29: #{tpu_custom_call.1} parent=1 // pred_fallthru
      _
    // Predicated region
    $region30: #{tpu_custom_call.1} parent=1 // pred_check
      _
    $region31: #{tpu_custom_call.1} parent=1 // pred_check_branch
      %135 = sbr.rel (0) target = $region33
    $region32: #{tpu_custom_call.1} parent=1 // pred_region
      %136 = dma.done [#allocation5], 16
    $region33: #{tpu_custom_call.1} parent=1 // pred_fallthru
      _
    // Predicated region
    $region34: #{tpu_custom_call.1} parent=1 // pred_check
      _
    $region35: #{tpu_custom_call.1} parent=1 // pred_check_branch
      %138 = sbr.rel (0) target = $region37
    $region36: #{tpu_custom_call.1} parent=1 // pred_region
      %139 = dma.done [#allocation8], 16
    $region37: #{tpu_custom_call.1} parent=1 // pred_fallthru
      _
    %140 = vsyncpa [#allocation4], 1
    %141 = vsyncpa [#allocation5], 1
    %142 = vsyncpa [#allocation8], 1

</llo_original>
